<compile_context>
chip_gen: v7x
topology: tpu7x:2x2x1
jax: 0.10.0
libtpu: 0.0.40
codegen_flags: <defaults>
</compile_context>

<pallas_src>
import math

import jax
import jax.numpy as jnp
from jax import lax
from jax.experimental import pallas as pl
from jax.experimental.pallas import tpu as pltpu

# ---- ArcMargin constants (defaults of the PyTorch module) -------------------
S = 64.0
M = 0.5
COS_M = math.cos(M)
SIN_M = math.sin(M)
MM = math.sin(math.pi - M) * M
THRESHOLD = math.cos(math.pi - M)
EPS = 1e-6
NORM_EPS_SQ = 1e-24          # (1e-12)^2, matches F.normalize(eps=1e-12)
EASY_MARGIN = False


# ---- Pallas kernel: weight-normalize (cached) + cosine matmul + margin ------
def arc_margin_kernel(label_ref, emb_ref, w_ref, out_ref, wn_ref):
    # label_ref: (TB, 1)  int32    integer class label per batch row
    # emb_ref:   (TB, E)  f32      pre-normalized embeddings (batch tile)
    # w_ref:     (TC, E)  f32/bf16 un-normalized weight tile
    # out_ref:   (TB, TC) f32/bf16 logits tile
    # wn_ref:    (TC, E)  scratch  normalized weight tile (cached across the
    #                              inner batch axis)
    j = pl.program_id(0)              # class-tile index (outer, "parallel")
    i = pl.program_id(1)              # batch-tile index (inner, "arbitrary")
    tb, tc = out_ref.shape

    # Normalize the weight tile once per class tile.  The raw tile's block
    # index is constant in i, so it is DMA'd only once per class tile too.
    @pl.when(i == 0)
    def _():
        w = w_ref[...].astype(jnp.float32)
        inv = lax.rsqrt(
            jnp.maximum(jnp.sum(w * w, axis=-1, keepdims=True), NORM_EPS_SQ))
        wn_ref[...] = (w * inv).astype(wn_ref.dtype)

    # NT matmul on the MXU, contracting E with E.  With compute_dtype=bf16
    # both operands are bf16 -> native-rate MXU; accumulation stays f32.
    emb = emb_ref[...].astype(wn_ref.dtype)
    cosine = lax.dot_general(
        emb, wn_ref[...],
        dimension_numbers=(((1,), (1,)), ((), ())),
        preferred_element_type=jnp.float32)
    cosine = jnp.clip(cosine, -1.0 + EPS, 1.0 - EPS)

    # One-hot mask built in-kernel from the int32 label column (no dense
    # one-hot matrix ever touches HBM).
    col = j * tc + lax.broadcasted_iota(jnp.int32, (tb, tc), 1)
    mask = label_ref[...] == col              # (TB,1) broadcasts vs (TB,TC)

    # Margin math only on the per-row label column ((TB,1)), not the full tile:
    # pull the label-column cosine out with a masked row-sum, then blend back.
    lc = jnp.sum(jnp.where(mask, cosine, 0.0), axis=-1, keepdims=True)
    sine = jnp.sqrt(jnp.maximum(1.0 - lc * lc, 0.0))
    phi = lc * COS_M - sine * SIN_M
    if EASY_MARGIN:
        phi = jnp.where(lc > 0.0, phi, lc)
    else:
        phi = jnp.where(lc > THRESHOLD, phi, lc - MM)

    out = cosine + mask.astype(jnp.float32) * (phi - lc)
    out_ref[...] = (out * S).astype(out_ref.dtype)


def arc_margin(emb, weight, labels, *, tile_b=1024, tile_c=2048,
               compute_dtype=jnp.bfloat16, out_dtype=jnp.float32):
    """ArcFace margin head.

    emb:     [B, E] float — embeddings (normalized here once, in f32)
    weight:  [C, E] float — ArcMargin weight (un-normalized)
    labels:  [B] int      — integer class labels
    compute_dtype: dtype of the weight HBM stream / MXU operands (bf16 default
                   -> half the dominant HBM read + native-rate MXU; pass
                   jnp.float32 for exact PyTorch numerics).
    out_dtype:     logits dtype (bf16 halves the B*C output write if the
                   downstream loss accepts it).
    returns: [B, C] logits
    """
    B, E = emb.shape
    C, E2 = weight.shape
    assert E == E2
    assert labels.shape == (B,)

    # Hoist embedding L2-normalization out of the kernel (done once, f32).
    emb_n = emb.astype(jnp.float32)
    emb_n = emb_n * lax.rsqrt(
        jnp.maximum(jnp.sum(emb_n * emb_n, axis=-1, keepdims=True),
                    NORM_EPS_SQ))

    # Stream the dominant C x E weight in compute_dtype (no other copies).
    w = weight if weight.dtype == compute_dtype else weight.astype(compute_dtype)
    lbl = labels.astype(jnp.int32).reshape(B, 1)

    # Tile sizes obey the (8,128) rule; NO host-side padding or output slicing:
    # grids use pl.cdiv and Pallas masks the ragged last blocks.  NaN/Inf from
    # rsqrt over out-of-bounds weight rows only reaches output columns >= C,
    # which are never written back (each output column depends only on its own
    # weight row).
    tile_b = max(8, min(tile_b, (B // 8) * 8)) if B >= 8 else B
    tile_c = max(128, min(tile_c, (C // 128) * 128)) if C >= 128 else C
    grid = (pl.cdiv(C, tile_c), pl.cdiv(B, tile_b))   # class outer, batch inner

    return pl.pallas_call(
        arc_margin_kernel,
        out_shape=jax.ShapeDtypeStruct((B, C), out_dtype),
        grid=grid,
        in_specs=[
            pl.BlockSpec((tile_b, 1), lambda j, i: (i, 0)),   # int labels
            pl.BlockSpec((tile_b, E), lambda j, i: (i, 0)),   # normalized emb
            pl.BlockSpec((tile_c, E), lambda j, i: (j, 0)),   # weight tile
        ],
        out_specs=pl.BlockSpec((tile_b, tile_c), lambda j, i: (i, j)),
        scratch_shapes=[pltpu.VMEM((tile_c, E), compute_dtype)],
        compiler_params=pltpu.CompilerParams(
            # Class axis "parallel" (>= 25 tiles at C=51k -> shards across
            # v7x's two TensorCores); batch axis "arbitrary" so the cached
            # normalized-weight scratch carry is legal.
            dimension_semantics=("parallel", "arbitrary"),
            # tile_b=1024 / tile_c=2048(bf16) working set ~26 MiB double-
            # buffered: above the 16/32 MiB scoped defaults, well under the
            # 64 MiB v7x physical budget (and v5e/v6e's 128 MiB).
            vmem_limit_bytes=48 * 1024 * 1024),
    )(lbl, emb_n, w)


# ---- Backbone stand-in -------------------------------------------------------
# TODO(synk): the real backbone is a *pretrained* torchvision ShuffleNetV2 /
# ResNet50 (weights not reproducible in-script); stand-in = global average
# pool over HW + a deterministic linear projection to the embedding size.
def backbone_embed(x_nchw, proj_w, proj_b):
    pooled = jnp.mean(x_nchw, axis=(2, 3))          # [B, C_in]
    return pooled @ proj_w.T + proj_b               # [B, E]


def arcface_forward(x_nchw, labels, params, **kw):
    emb = backbone_embed(x_nchw, params["proj_w"], params["proj_b"])
    return arc_margin(emb, params["margin_w"], labels, **kw)


# ---- Pure-JAX reference for correctness check -------------------------------
def arc_margin_ref(emb, weight, label_onehot, compute_dtype=jnp.float32):
    q = lambda a: a.astype(compute_dtype).astype(jnp.float32)
    norm = lambda a: a * lax.rsqrt(
        jnp.maximum(jnp.sum(a * a, axis=-1, keepdims=True), NORM_EPS_SQ))
    emb_n = q(norm(emb.astype(jnp.float32)))
    w_n = q(norm(q(weight.astype(jnp.float32))))
    cosine = jnp.clip(
        jnp.dot(emb_n, w_n.T, precision=lax.Precision.HIGHEST),
        -1.0 + EPS, 1.0 - EPS)
    sine = jnp.sqrt(1.0 - cosine * cosine)
    phi = cosine * COS_M - sine * SIN_M
    phi = jnp.where(cosine > THRESHOLD, phi, cosine - MM)
    return jnp.where(label_onehot != 0, phi, cosine) * S


if __name__ == "__main__":
    # Small shapes consistent with the module's forward.
    B, C_IN, H, W = 2, 4, 16, 16          # image input, NCHW
    EMB = 128                             # embedding size (512 in the paper)
    CLASSNUM = 300                        # deliberately NOT a multiple of 128
                                          # (real classnum=51332 isn't either)

    key = jax.random.PRNGKey(0)
    k_x, k_lbl, k_w, k_pw, k_pb = jax.random.split(key, 5)

    x = jax.random.normal(k_x, (B, C_IN, H, W), dtype=jnp.float32)
    labels = jax.random.randint(k_lbl, (B,), 0, CLASSNUM, dtype=jnp.int32)

    # Xavier-uniform init for the ArcMargin weight [classnum, emb].
    limit = math.sqrt(6.0 / (CLASSNUM + EMB))
    margin_w = jax.random.uniform(
        k_w, (CLASSNUM, EMB), minval=-limit, maxval=limit, dtype=jnp.float32)

    # Deterministic init for the stand-in projection.
    plimit = math.sqrt(6.0 / (C_IN + EMB))
    proj_w = jax.random.uniform(
        k_pw, (EMB, C_IN), minval=-plimit, maxval=plimit, dtype=jnp.float32)
    proj_b = jax.random.uniform(
        k_pb, (EMB,), minval=-0.01, maxval=0.01, dtype=jnp.float32)

    params = {"margin_w": margin_w, "proj_w": proj_w, "proj_b": proj_b}

    emb = backbone_embed(x, proj_w, proj_b)
    label_onehot = jax.nn.one_hot(labels, CLASSNUM, dtype=jnp.float32)

    # f32 compute path (faithful to the PyTorch module's numerics).
    out_f32 = jax.block_until_ready(
        arc_margin(emb, margin_w, labels, compute_dtype=jnp.float32))
    ref_f32 = arc_margin_ref(emb, margin_w, label_onehot, jnp.float32)
    assert out_f32.shape == (B, CLASSNUM)
    assert jnp.allclose(out_f32, ref_f32, atol=5e-4, rtol=5e-4), \
        "f32 mismatch vs ref"

    # Default bf16 compute path: bf16 weight stream + native-rate bf16 MXU
    # (margin math stays f32).  Reference quantizes identically.
    out_bf16 = jax.block_until_ready(arc_margin(emb, margin_w, labels))
    ref_bf16 = arc_margin_ref(emb, margin_w, label_onehot, jnp.bfloat16)
    assert out_bf16.shape == (B, CLASSNUM)
    assert jnp.allclose(out_bf16, ref_bf16, atol=2e-2, rtol=2e-2), \
        "bf16 mismatch vs ref"

    # Full forward (backbone stand-in + ArcMargin kernel).
    out_full = jax.block_until_ready(arcface_forward(x, labels, params))
    assert out_full.shape == (B, CLASSNUM)

    print("KERNEL_OK")
</pallas_src>

<mosaic_0001>
module attributes {stable_mosaic.version = 11 : i64} {
  func.func @arc_margin_kernel(%arg0: i32, %arg1: i32, %arg2: memref<2x1xi32, #tpu.memory_space<vmem>>, %arg3: memref<2x128xf32, #tpu.memory_space<vmem>>, %arg4: memref<256x128xf32, #tpu.memory_space<vmem>>, %arg5: memref<2x256xf32, #tpu.memory_space<vmem>>, %arg6: memref<256x128xf32, #tpu.memory_space<vmem>>) attributes {dimension_semantics = [#tpu.dimension_semantics<parallel>, #tpu.dimension_semantics<arbitrary>], iteration_bounds = array<i64: 2, 1>, scalar_prefetch = 0 : i64, scratch_operands = 1 : i64, tpu.core_type = #tpu.core_type<tc>, window_params = [{transform_indices = @transform_0, window_bounds = array<i64: 2, 1>}, {transform_indices = @transform_1, window_bounds = array<i64: 2, 128>}, {transform_indices = @transform_2, window_bounds = array<i64: 256, 128>}, {transform_indices = @transform_3, window_bounds = array<i64: 2, 256>}]} {
    %c0_i32 = arith.constant 0 : i32
    %0 = arith.cmpi eq, %arg1, %c0_i32 : i32
    %1 = arith.extui %0 : i1 to i32
    %c0_i32_0 = arith.constant 0 : i32
    %2 = arith.cmpi ne, %1, %c0_i32_0 : i32
    scf.if %2 {
      %c0_19 = arith.constant 0 : index
      %c0_20 = arith.constant 0 : index
      %46 = vector.load %arg4[%c0_19, %c0_20] : memref<256x128xf32, #tpu.memory_space<vmem>>, vector<256x128xf32>
      %47 = arith.mulf %46, %46 : vector<256x128xf32>
      %cst_21 = arith.constant dense<0.000000e+00> : vector<256xf32>
      %48 = vector.multi_reduction <add>, %47, %cst_21 [1] : vector<256x128xf32> to vector<256xf32>
      %49 = vector.shape_cast %48 : vector<256xf32> to vector<256x1xf32>
      %cst_22 = arith.constant 1.000000e-24 : f32
      %50 = vector.broadcast %cst_22 : f32 to vector<256x1xf32>
      %51 = arith.maximumf %49, %50 : vector<256x1xf32>
      %52 = math.rsqrt %51 : vector<256x1xf32>
      %53 = vector.broadcast %52 : vector<256x1xf32> to vector<256x128xf32>
      %54 = arith.mulf %46, %53 : vector<256x128xf32>
      %c0_23 = arith.constant 0 : index
      %c0_24 = arith.constant 0 : index
      %55 = vector.load %arg6[%c0_23, %c0_24] : memref<256x128xf32, #tpu.memory_space<vmem>>, vector<256x128xf32>
      tpu.vector_store %arg6[%c0_23, %c0_24], %54 {strides = array<i32>} : memref<256x128xf32, #tpu.memory_space<vmem>>, vector<256x128xf32>,
    } else {
    }
    %c0 = arith.constant 0 : index
    %c0_1 = arith.constant 0 : index
    %3 = vector.load %arg3[%c0, %c0_1] : memref<2x128xf32, #tpu.memory_space<vmem>>, vector<2x128xf32>
    %c0_2 = arith.constant 0 : index
    %c0_3 = arith.constant 0 : index
    %4 = vector.load %arg6[%c0_2, %c0_3] : memref<256x128xf32, #tpu.memory_space<vmem>>, vector<256x128xf32>
    %cst = arith.constant dense<0.000000e+00> : vector<2x256xf32>
    %5 = tpu.matmul %3, %4, %cst {dimension_numbers = #tpu.dot_dimension_numbers<[1], [1], [0], [0], [0, 0, 1, 0], [], []>} : vector<2x128xf32>, vector<256x128xf32>, vector<2x256xf32> -> vector<2x256xf32>
    %cst_4 = arith.constant -0.999998986 : f32
    %cst_5 = arith.constant 0.999998986 : f32
    %6 = vector.broadcast %cst_4 : f32 to vector<2x256xf32>
    %7 = arith.maximumf %6, %5 : vector<2x256xf32>
    %8 = vector.broadcast %cst_5 : f32 to vector<2x256xf32>
    %9 = arith.minimumf %8, %7 : vector<2x256xf32>
    %c256_i32 = arith.constant 256 : i32
    %10 = arith.muli %arg0, %c256_i32 : i32
    %11 = tpu.iota {dimensions = array<i32: 1>} : vector<2x256xi32>
    %12 = vector.broadcast %10 : i32 to vector<2x256xi32>
    %13 = arith.addi %12, %11 : vector<2x256xi32>
    %c0_6 = arith.constant 0 : index
    %c0_7 = arith.constant 0 : index
    %14 = vector.load %arg2[%c0_6, %c0_7] : memref<2x1xi32, #tpu.memory_space<vmem>>, vector<2x1xi32>
    %15 = vector.broadcast %14 : vector<2x1xi32> to vector<2x256xi32>
    %16 = arith.cmpi eq, %15, %13 : vector<2x256xi32>
    %cst_8 = arith.constant 0.000000e+00 : f32
    %17 = vector.broadcast %cst_8 : f32 to vector<2x256xf32>
    %18 = arith.select %16, %9, %17 : vector<2x256xi1>, vector<2x256xf32>
    %cst_9 = arith.constant dense<0.000000e+00> : vector<2xf32>
    %19 = vector.multi_reduction <add>, %18, %cst_9 [1] : vector<2x256xf32> to vector<2xf32>
    %20 = vector.shape_cast %19 : vector<2xf32> to vector<2x1xf32>
    %21 = arith.mulf %20, %20 : vector<2x1xf32>
    %cst_10 = arith.constant 1.000000e+00 : f32
    %22 = vector.broadcast %cst_10 : f32 to vector<2x1xf32>
    %23 = arith.subf %22, %21 : vector<2x1xf32>
    %cst_11 = arith.constant 0.000000e+00 : f32
    %24 = vector.broadcast %cst_11 : f32 to vector<2x1xf32>
    %25 = arith.maximumf %23, %24 : vector<2x1xf32>
    %26 = math.sqrt %25 : vector<2x1xf32>
    %cst_12 = arith.constant 0.87758255 : f32
    %27 = vector.broadcast %cst_12 : f32 to vector<2x1xf32>
    %28 = arith.mulf %20, %27 : vector<2x1xf32>
    %cst_13 = arith.constant 0.47942555 : f32
    %29 = vector.broadcast %cst_13 : f32 to vector<2x1xf32>
    %30 = arith.mulf %26, %29 : vector<2x1xf32>
    %31 = arith.subf %28, %30 : vector<2x1xf32>
    %cst_14 = arith.constant -0.87758255 : f32
    %32 = vector.broadcast %cst_14 : f32 to vector<2x1xf32>
    %33 = arith.cmpf ogt, %20, %32 : vector<2x1xf32>
    %cst_15 = arith.constant 0.239712775 : f32
    %34 = vector.broadcast %cst_15 : f32 to vector<2x1xf32>
    %35 = arith.subf %20, %34 : vector<2x1xf32>
    %36 = arith.select %33, %31, %35 : vector<2x1xi1>, vector<2x1xf32>
    %37 = arith.extui %16 : vector<2x256xi1> to vector<2x256xi32>
    %38 = arith.sitofp %37 : vector<2x256xi32> to vector<2x256xf32>
    %39 = arith.subf %36, %20 : vector<2x1xf32>
    %40 = vector.broadcast %39 : vector<2x1xf32> to vector<2x256xf32>
    %41 = arith.mulf %38, %40 : vector<2x256xf32>
    %42 = arith.addf %9, %41 : vector<2x256xf32>
    %cst_16 = arith.constant 6.400000e+01 : f32
    %43 = vector.broadcast %cst_16 : f32 to vector<2x256xf32>
    %44 = arith.mulf %42, %43 : vector<2x256xf32>
    %c0_17 = arith.constant 0 : index
    %c0_18 = arith.constant 0 : index
    %45 = vector.load %arg5[%c0_17, %c0_18] : memref<2x256xf32, #tpu.memory_space<vmem>>, vector<2x256xf32>
    tpu.vector_store %arg5[%c0_17, %c0_18], %44 {strides = array<i32>} : memref<2x256xf32, #tpu.memory_space<vmem>>, vector<2x256xf32>,
    return
  }
  func.func @transform_0(%arg0: i32, %arg1: i32) -> (i32, i32) {
    %c0_i32 = arith.constant 0 : i32
    %c0_i32_0 = arith.constant 0 : i32
    return %arg1, %c0_i32 : i32, i32
  }
  func.func @transform_1(%arg0: i32, %arg1: i32) -> (i32, i32) {
    %c0_i32 = arith.constant 0 : i32
    %c0_i32_0 = arith.constant 0 : i32
    return %arg1, %c0_i32 : i32, i32
  }
  func.func @transform_2(%arg0: i32, %arg1: i32) -> (i32, i32) {
    %c0_i32 = arith.constant 0 : i32
    %c0_i32_0 = arith.constant 0 : i32
    return %arg0, %c0_i32 : i32, i32
  }
  func.func @transform_3(%arg0: i32, %arg1: i32) -> (i32, i32) {
    %c0_i32 = arith.constant 0 : i32
    return %arg1, %arg0 : i32, i32
  }
}

</mosaic_0001>

<llo_original>
// kernel: tpu_custom_call.1
$region0: #{tpu_custom_call.1}
  #allocation0 [shape = 'u32[]', space=smem, size = 0x4, offset = 0x4, fixed_abs, tag = 'smem constant byte address 0x4 - core index']
  #allocation1 [shape = 'u32[144,128]{1,0:T(1,128)}', space=vmem, size = 0x12000, scoped, tag = 'internal scratch']
  #allocation2 [shape = 'f32[256,128]{1,0:T(8,128)}', space=vmem, size = 0x20000, scoped, tag = 'scratch operand']
  %s0 = inlined_call_operand.vmem [shape: s32[2,1], index: 0, kind: input, shape index: {}]
  %s1 = inlined_call_operand.vmem [shape: f32[2,128], index: 1, kind: input, shape index: {}]
  %s2 = inlined_call_operand.hbm [shape: f32[300,128], index: 2, kind: input, shape index: {}]
  %s3 = inlined_call_operand.hbm [shape: f32[2,300], index: 3, kind: output, shape index: {}]
  %s4 = sld [smem:[#allocation0]]
  $region53: #{tpu_custom_call.1} parent=0
    _
  %s6 = ssub.s32 1, %s4
  %s7 = scalar_select 0, %s6, %s4
  $region1: #{tpu_custom_call.1} parent=0
    #allocation3 [shape = 'u8[262144]{0}', space=vmem, size = 0x40000, scoped, tag = 'input window, operand 2']
    #allocation4 [shape = 's32[2]{0}', space=sflag, size = 0x8, scoped, tag = 'scoped memory for tpu_custom_call.1']
    #allocation5 [shape = 's32[2]{0}', space=sflag, size = 0x8, scoped, tag = 'scoped memory for tpu_custom_call.1']
    #allocation6 [shape = 'u8[4096]{0}', space=vmem, size = 0x1000, scoped, tag = 'output window, operand 0']
    %8 = vsyncpa [#allocation4], 0
    %s9 = scalar_lea.sflag [#allocation4], 1
    %10 = vsyncpa %s9, 0
    %11 = vsyncpa [#allocation5], 0
    %s12 = scalar_lea.sflag [#allocation5], 1
    %13 = vsyncpa %s12, 0
    loop: start=0, step=1, limit=4
    $region2: #{tpu_custom_call.1} parent=1 // loop_pre_header
      _
    $region3: #{tpu_custom_call.1} parent=1 // loop_header
      %s15 = sphi 0, %s19
      %p16 = scmp.ge.s32.totalorder %s15, 4
      %s22 = sphi 0, %s34
      %s23 = sphi 0, %s30
      %s24 = sphi 0, %s22
      %s25 = sphi 0, %s23
      %s26 = sphi 0, %s24
      %s27 = sphi 0, %s25
      %s37 = sphi 0, %s39
      %s40 = sphi 0, %s37
      %s41 = sphi 0, %s40
      %s57 = sphi 0, %s41
      %s63 = sphi 0, %s65
      %s66 = sphi 0, %s63
      %s67 = sphi 0, %s66
      %s83 = sphi 0, %s67
      %s89 = sphi 0, %s91
      %s92 = sphi 0, %s89
      %s93 = sphi 0, %s92
      %s109 = sphi 0, %s93
      %s117 = sphi 0, %s119
      %s120 = sphi 0, %s117
      %s121 = sphi 0, %s120
      %s137 = sphi 0, %s121
    $region4: #{tpu_custom_call.1} parent=1 // loop_header_branch
      %18 = sbr.rel (%p16) target = $region8
    $region5: #{tpu_custom_call.1} parent=1 // loop_body
      %s20 = ssub.s32 %s15, 1
      %s21 = ssub.s32 %s15, 2
      %s28 = sadd.s32 1, %s23
      %p29 = scmp.ge.s32.totalorder %s28, 1
      %s30 = scalar_select %p29, 0, %s28
      %s31 = sadd.s32 1, %s22
      %s32 = scalar_select %p29, %s31, %s22
      %p33 = scmp.ge.s32.totalorder %s32, 2
      %s34 = scalar_select %p33, 0, %s32
      %s35 = ssub.s32 %s23, %s30
      %p36 = scmp.eq.s32.totalorder %s35, 0
      %s38 = sadd.s32 %s37, 1
      %s39 = scalar_select %p36, %s37, %s38
      %p42 = pneg %p36
      %p43 = scmp.eq.s32.totalorder %s15, 1
      %p44 = por %p42, %p43
      %p45 = scmp.ne.s32.totalorder %s37, %s40
      %p46 = scmp.eq.s32.totalorder %s15, 0
      %p47 = por %p45, %p46
      %p48 = scmp.ne.s32.totalorder %s37, %s40
      %p49 = scmp.eq.s32.totalorder %s20, 1
      %p50 = por %p48, %p49
      %p51 = scmp.ne.s32.totalorder %s40, %s41
      %p52 = scmp.eq.s32.totalorder %s20, 0
      %p53 = por %p51, %p52
      %p54 = scmp.ne.s32.totalorder %s40, %s41
      %p55 = scmp.eq.s32.totalorder %s21, 1
      %p56 = por %p54, %p55
      %p58 = scmp.ne.s32.totalorder %s41, %s57
      %p59 = scmp.eq.s32.totalorder %s21, 0
      %p60 = por %p58, %p59
      %s61 = ssub.s32 %s23, %s30
      %p62 = scmp.eq.s32.totalorder %s61, 0
      %s64 = sadd.s32 %s63, 1
      %s65 = scalar_select %p62, %s63, %s64
      %p68 = pneg %p62
      %p69 = scmp.eq.s32.totalorder %s15, 1
      %p70 = por %p68, %p69
      %p71 = scmp.ne.s32.totalorder %s63, %s66
      %p72 = scmp.eq.s32.totalorder %s15, 0
      %p73 = por %p71, %p72
      %p74 = scmp.ne.s32.totalorder %s63, %s66
      %p75 = scmp.eq.s32.totalorder %s20, 1
      %p76 = por %p74, %p75
      %p77 = scmp.ne.s32.totalorder %s66, %s67
      %p78 = scmp.eq.s32.totalorder %s20, 0
      %p79 = por %p77, %p78
      %p80 = scmp.ne.s32.totalorder %s66, %s67
      %p81 = scmp.eq.s32.totalorder %s21, 1
      %p82 = por %p80, %p81
      %p84 = scmp.ne.s32.totalorder %s67, %s83
      %p85 = scmp.eq.s32.totalorder %s21, 0
      %p86 = por %p84, %p85
      %s87 = ssub.s32 %s22, %s34
      %p88 = scmp.eq.s32.totalorder %s87, 0
      %s90 = sadd.s32 %s89, 1
      %s91 = scalar_select %p88, %s89, %s90
      %p94 = pneg %p88
      %p95 = scmp.eq.s32.totalorder %s15, 1
      %p96 = por %p94, %p95
      %p97 = scmp.ne.s32.totalorder %s89, %s92
      %p98 = scmp.eq.s32.totalorder %s15, 0
      %p99 = por %p97, %p98
      %p100 = scmp.ne.s32.totalorder %s89, %s92
      %p101 = scmp.eq.s32.totalorder %s20, 1
      %p102 = por %p100, %p101
      %p103 = scmp.ne.s32.totalorder %s92, %s93
      %p104 = scmp.eq.s32.totalorder %s20, 0
      %p105 = por %p103, %p104
      %p106 = scmp.ne.s32.totalorder %s92, %s93
      %p107 = scmp.eq.s32.totalorder %s21, 1
      %p108 = por %p106, %p107
      %p110 = scmp.ne.s32.totalorder %s93, %s109
      %p111 = scmp.eq.s32.totalorder %s21, 0
      %p112 = por %p110, %p111
      %s113 = ssub.s32 %s23, %s30
      %s114 = ssub.s32 %s22, %s34
      %s115 = sor.u32 %s113, %s114
      %p116 = scmp.eq.s32.totalorder %s115, 0
      %s118 = sadd.s32 %s117, 1
      %s119 = scalar_select %p116, %s117, %s118
      %p122 = pneg %p116
      %p123 = scmp.eq.s32.totalorder %s15, 1
      %p124 = por %p122, %p123
      %p125 = scmp.ne.s32.totalorder %s117, %s120
      %p126 = scmp.eq.s32.totalorder %s15, 0
      %p127 = por %p125, %p126
      %p128 = scmp.ne.s32.totalorder %s117, %s120
      %p129 = scmp.eq.s32.totalorder %s20, 1
      %p130 = por %p128, %p129
      %p131 = scmp.ne.s32.totalorder %s120, %s121
      %p132 = scmp.eq.s32.totalorder %s20, 0
      %p133 = por %p131, %p132
      %p134 = scmp.ne.s32.totalorder %s120, %s121
      %p135 = scmp.eq.s32.totalorder %s21, 1
      %p136 = por %p134, %p135
      %p138 = scmp.ne.s32.totalorder %s121, %s137
      %p139 = scmp.eq.s32.totalorder %s21, 0
      %p140 = por %p138, %p139
      %p141 = scmp.le.s32.totalorder 1, %s15
      %p142 = scmp.lt.s32.totalorder %s15, 3
      %p143 = pnand %p141, %p142
      %p144 = pneg %p143
      // Predicated region
      $region9: #{tpu_custom_call.1} parent=5 // pred_check
        _
      $region10: #{tpu_custom_call.1} parent=5 // pred_check_branch
        %146 = sbr.rel (%p143) target = $region12
      $region11: #{tpu_custom_call.1} parent=5 // pred_region
        %s147 = ssub.s32 %s15, 1
        // Predicated region
        $region13: #{tpu_custom_call.1} parent=11 // pred_check
          %p148 = pneg %p53
        $region14: #{tpu_custom_call.1} parent=11 // pred_check_branch
          %150 = sbr.rel (%p148) target = $region16
        $region15: #{tpu_custom_call.1} parent=11 // pred_region
          %p151 = scmp.lt.s32.totalorder %s25, 0
          %s152 = scalar_select %p151, %s25, 0
          %s153 = smul.addr %s152, 2
          %s154 = scalar_lea.vmem %s0, %s153
        $region16: #{tpu_custom_call.1} parent=11 // pred_fallthru
          _
        // Predicated region
        $region17: #{tpu_custom_call.1} parent=11 // pred_check
          %p155 = pneg %p79
        $region18: #{tpu_custom_call.1} parent=11 // pred_check_branch
          %157 = sbr.rel (%p155) target = $region20
        $region19: #{tpu_custom_call.1} parent=11 // pred_region
          %p158 = scmp.lt.s32.totalorder %s25, 0
          %s159 = scalar_select %p158, %s25, 0
          %s160 = smul.addr %s159, 2
          %s161 = scalar_lea.vmem %s1, %s160
        $region20: #{tpu_custom_call.1} parent=11 // pred_fallthru
          _
      $region12: #{tpu_custom_call.1} parent=5 // pred_fallthru
        _
      %p162 = scmp.lt.s32.totalorder %s15, 2
      // Predicated region
      $region21: #{tpu_custom_call.1} parent=5 // pred_check
        %p163 = pneg %p162
      $region22: #{tpu_custom_call.1} parent=5 // pred_check_branch
        %165 = sbr.rel (%p163) target = $region24
      $region23: #{tpu_custom_call.1} parent=5 // pred_region
        // Predicated region
        $region25: #{tpu_custom_call.1} parent=23 // pred_check
          %p166 = pneg %p99
        $region26: #{tpu_custom_call.1} parent=23 // pred_check_branch
          %168 = sbr.rel (%p166) target = $region28
        $region27: #{tpu_custom_call.1} parent=23 // pred_region
          %s169 = sand.u32 %s89, 1
          %s170 = scalar_lea.sflag [#allocation4], %s169
          %s171 = sand.u32 %s89, 1
          %s172 = smul.addr %s171, 256
          %s173 = scalar_lea.vmem [#allocation3], %s172
          %s174 = smul.u32 32, %s22
          %s175 = ssub.s32 38, %s174
          %p176 = scmp.lt.s32.totalorder %s175, 32
          %s177 = scalar_select %p176, %s175, 32
          %s178 = smul.u32 128, %s177
          %s180 = ssub.s32 4096, %s178
          %181 = vsyncadd %s170, %s180
          %p182 = scmp.ne.s32.totalorder 0, %s178
          %s183 = smul.addr %s174, 128
          %s184 = scalar_lea.hbm %s2, %s183
          %s185 = smul.u32 8, %s177
          %s186 = sshll.u32 %s173, 4
          %s187 = int_to_ptr.vmem [resolvable:$true] %s186
          %s188 = sshll.u32 %s185, 4
          %192 = dma.hbm_to_vmem [thread:$0]  (%p182), %s184, %s188, %s187, %s170, 128, 128, 8
        $region28: #{tpu_custom_call.1} parent=23 // pred_fallthru
          _
      $region24: #{tpu_custom_call.1} parent=5 // pred_fallthru
        _
      %p193 = scmp.le.s32.totalorder 1, %s15
      %p194 = scmp.lt.s32.totalorder %s15, 3
      %p195 = pnand %p193, %p194
      %p196 = pneg %p195
      // Predicated region
      $region29: #{tpu_custom_call.1} parent=5 // pred_check
        _
      $region30: #{tpu_custom_call.1} parent=5 // pred_check_branch
        %198 = sbr.rel (%p195) target = $region32
      $region31: #{tpu_custom_call.1} parent=5 // pred_region
        %s199 = ssub.s32 %s15, 1
        %s200 = sand.u32 %s92, 1
        %s201 = scalar_lea.sflag [#allocation4], %s200
        %s202 = sand.u32 %s92, 1
        %s203 = smul.addr %s202, 256
        %s204 = scalar_lea.vmem [#allocation3], %s203
        // Predicated region
        $region33: #{tpu_custom_call.1} parent=31 // pred_check
          %p205 = pneg %p105
        $region34: #{tpu_custom_call.1} parent=31 // pred_check_branch
          %207 = sbr.rel (%p205) target = $region36
        $region35: #{tpu_custom_call.1} parent=31 // pred_region
          %208 = dma.done %s201, 4096
        $region36: #{tpu_custom_call.1} parent=31 // pred_fallthru
          _
        %p209 = scmp.lt.s32.totalorder %s25, 0
        %s210 = scalar_select %p209, %s25, 0
        %s211 = smul.addr %s210, 2
        %s212 = scalar_lea.vmem %s0, %s211
        %p213 = pneg %p53
        %p214 = pneg %p50
        %p215 = scmp.lt.s32.totalorder %s25, 0
        %s216 = scalar_select %p215, %s25, 0
        %s217 = smul.addr %s216, 2
        %s218 = scalar_lea.vmem %s1, %s217
        %p219 = pneg %p79
        %p220 = pneg %p76
        %s221 = sand.u32 %s92, 1
        %s222 = scalar_lea.sflag [#allocation4], %s221
        %s223 = sand.u32 %s92, 1
        %s224 = smul.addr %s223, 256
        %s225 = scalar_lea.vmem [#allocation3], %s224
        %p226 = pneg %p105
        %p227 = pneg %p102
        %p228 = pneg %p133
        %p229 = pneg %p130
        %s230 = sand.u32 %s120, 1
        %s231 = scalar_lea.sflag [#allocation5], %s230
        %s232 = sand.u32 %s120, 1
        %s233 = smul.addr %s232, 4
        %s234 = scalar_lea.vmem [#allocation6], %s233
        %p235 = scmp.lt.s32.totalorder %s25, 0
        %s236 = scalar_select %p235, %s25, 0
        %s237 = smul.addr %s236, 2
        %s238 = scalar_lea.vmem %s0, %s237
        %p239 = scmp.lt.s32.totalorder %s25, 0
        %s240 = scalar_select %p239, %s25, 0
        %s241 = smul.addr %s240, 2
        %s242 = scalar_lea.vmem %s1, %s241
        %s243 = smul.u32 32, %s24
        %s244 = ssub.s32 38, %s243
        %p245 = scmp.lt.s32.totalorder %s244, 32
        %s246 = scalar_select %p245, %s244, 32
        %s247 = smul.u32 128, %s246
        %s248 = smul.u32 2, %s24
        %s249 = ssub.s32 3, %s248
        %p250 = scmp.lt.s32.totalorder %s249, 2
        %s251 = scalar_select %p250, %s249, 2
        %s252 = smul.u32 32, %s251
        %p253 = scmp.eq.s32.totalorder %s25, 0
        // Predicated region
        $region37: #{tpu_custom_call.1} parent=31 // pred_check
          %p254 = pneg %p253
        $region38: #{tpu_custom_call.1} parent=31 // pred_check_branch
          %256 = sbr.rel (%p254) target = $region40
        $region39: #{tpu_custom_call.1} parent=31 // pred_region
          %v257 = vld [vmem:[%s204] sm:$0xff]
          %v258 = vld [vmem:[%s204 + $0x8] sm:$0xff]
          %v259 = vld [vmem:[%s204 + $0x10] sm:$0xff]
          %v260 = vld [vmem:[%s204 + $0x18] sm:$0xff]
          %v261 = vld [vmem:[%s204 + $0x20] sm:$0xff]
          %v262 = vld [vmem:[%s204 + $0x28] sm:$0xff]
          %v263 = vld [vmem:[%s204 + $0x30] sm:$0xff]
          %v264 = vld [vmem:[%s204 + $0x38] sm:$0xff]
          %v265 = vld [vmem:[%s204 + $0x40] sm:$0xff]
          %v266 = vld [vmem:[%s204 + $0x48] sm:$0xff]
          %v267 = vld [vmem:[%s204 + $0x50] sm:$0xff]
          %v268 = vld [vmem:[%s204 + $0x58] sm:$0xff]
          %v269 = vld [vmem:[%s204 + $0x60] sm:$0xff]
          %v270 = vld [vmem:[%s204 + $0x68] sm:$0xff]
          %v271 = vld [vmem:[%s204 + $0x70] sm:$0xff]
          %v272 = vld [vmem:[%s204 + $0x78] sm:$0xff]
          %v273 = vld [vmem:[%s204 + $0x80] sm:$0xff]
          %v274 = vld [vmem:[%s204 + $0x88] sm:$0xff]
          %v275 = vld [vmem:[%s204 + $0x90] sm:$0xff]
          %v276 = vld [vmem:[%s204 + $0x98] sm:$0xff]
          %v277 = vld [vmem:[%s204 + $0xa0] sm:$0xff]
          %v278 = vld [vmem:[%s204 + $0xa8] sm:$0xff]
          %v279 = vld [vmem:[%s204 + $0xb0] sm:$0xff]
          %v280 = vld [vmem:[%s204 + $0xb8] sm:$0xff]
          %v281 = vld [vmem:[%s204 + $0xc0] sm:$0xff]
          %v282 = vld [vmem:[%s204 + $0xc8] sm:$0xff]
          %v283 = vld [vmem:[%s204 + $0xd0] sm:$0xff]
          %v284 = vld [vmem:[%s204 + $0xd8] sm:$0xff]
          %v285 = vld [vmem:[%s204 + $0xe0] sm:$0xff]
          %v286 = vld [vmem:[%s204 + $0xe8] sm:$0xff]
          %v287 = vld [vmem:[%s204 + $0xf0] sm:$0xff]
          %v288 = vld [vmem:[%s204 + $0xf8] sm:$0xff]
          %v289 = vmul.f32 %v257, %v257
          %v290 = vmul.f32 %v258, %v258
          %v291 = vmul.f32 %v259, %v259
          %v292 = vmul.f32 %v260, %v260
          %v293 = vmul.f32 %v261, %v261
          %v294 = vmul.f32 %v262, %v262
          %v295 = vmul.f32 %v263, %v263
          %v296 = vmul.f32 %v264, %v264
          %v297 = vmul.f32 %v265, %v265
          %v298 = vmul.f32 %v266, %v266
          %v299 = vmul.f32 %v267, %v267
          %v300 = vmul.f32 %v268, %v268
          %v301 = vmul.f32 %v269, %v269
          %v302 = vmul.f32 %v270, %v270
          %v303 = vmul.f32 %v271, %v271
          %v304 = vmul.f32 %v272, %v272
          %v305 = vmul.f32 %v273, %v273
          %v306 = vmul.f32 %v274, %v274
          %v307 = vmul.f32 %v275, %v275
          %v308 = vmul.f32 %v276, %v276
          %v309 = vmul.f32 %v277, %v277
          %v310 = vmul.f32 %v278, %v278
          %v311 = vmul.f32 %v279, %v279
          %v312 = vmul.f32 %v280, %v280
          %v313 = vmul.f32 %v281, %v281
          %v314 = vmul.f32 %v282, %v282
          %v315 = vmul.f32 %v283, %v283
          %v316 = vmul.f32 %v284, %v284
          %v317 = vmul.f32 %v285, %v285
          %v318 = vmul.f32 %v286, %v286
          %v319 = vmul.f32 %v287, %v287
          %v320 = vmul.f32 %v288, %v288
          %321 = vadd.xlane.f32.xlu0 %v289
          %v322 = vpop.xlane.xlu0 %321
          %323 = vadd.xlane.f32.xlu0 %v290
          %v324 = vpop.xlane.xlu0 %323
          %325 = vadd.xlane.f32.xlu0 %v291
          %v326 = vpop.xlane.xlu0 %325
          %327 = vadd.xlane.f32.xlu0 %v292
          %v328 = vpop.xlane.xlu0 %327
          %329 = vadd.xlane.f32.xlu0 %v293
          %v330 = vpop.xlane.xlu0 %329
          %331 = vadd.xlane.f32.xlu0 %v294
          %v332 = vpop.xlane.xlu0 %331
          %333 = vadd.xlane.f32.xlu0 %v295
          %v334 = vpop.xlane.xlu0 %333
          %335 = vadd.xlane.f32.xlu0 %v296
          %v336 = vpop.xlane.xlu0 %335
          %337 = vadd.xlane.f32.xlu0 %v297
          %v338 = vpop.xlane.xlu0 %337
          %339 = vadd.xlane.f32.xlu0 %v298
          %v340 = vpop.xlane.xlu0 %339
          %341 = vadd.xlane.f32.xlu0 %v299
          %v342 = vpop.xlane.xlu0 %341
          %343 = vadd.xlane.f32.xlu0 %v300
          %v344 = vpop.xlane.xlu0 %343
          %345 = vadd.xlane.f32.xlu0 %v301
          %v346 = vpop.xlane.xlu0 %345
          %347 = vadd.xlane.f32.xlu0 %v302
          %v348 = vpop.xlane.xlu0 %347
          %349 = vadd.xlane.f32.xlu0 %v303
          %v350 = vpop.xlane.xlu0 %349
          %351 = vadd.xlane.f32.xlu0 %v304
          %v352 = vpop.xlane.xlu0 %351
          %353 = vadd.xlane.f32.xlu0 %v305
          %v354 = vpop.xlane.xlu0 %353
          %355 = vadd.xlane.f32.xlu0 %v306
          %v356 = vpop.xlane.xlu0 %355
          %357 = vadd.xlane.f32.xlu0 %v307
          %v358 = vpop.xlane.xlu0 %357
          %359 = vadd.xlane.f32.xlu0 %v308
          %v360 = vpop.xlane.xlu0 %359
          %361 = vadd.xlane.f32.xlu0 %v309
          %v362 = vpop.xlane.xlu0 %361
          %363 = vadd.xlane.f32.xlu0 %v310
          %v364 = vpop.xlane.xlu0 %363
          %365 = vadd.xlane.f32.xlu0 %v311
          %v366 = vpop.xlane.xlu0 %365
          %367 = vadd.xlane.f32.xlu0 %v312
          %v368 = vpop.xlane.xlu0 %367
          %369 = vadd.xlane.f32.xlu0 %v313
          %v370 = vpop.xlane.xlu0 %369
          %371 = vadd.xlane.f32.xlu0 %v314
          %v372 = vpop.xlane.xlu0 %371
          %373 = vadd.xlane.f32.xlu0 %v315
          %v374 = vpop.xlane.xlu0 %373
          %375 = vadd.xlane.f32.xlu0 %v316
          %v376 = vpop.xlane.xlu0 %375
          %377 = vadd.xlane.f32.xlu0 %v317
          %v378 = vpop.xlane.xlu0 %377
          %379 = vadd.xlane.f32.xlu0 %v318
          %v380 = vpop.xlane.xlu0 %379
          %381 = vadd.xlane.f32.xlu0 %v319
          %v382 = vpop.xlane.xlu0 %381
          %383 = vadd.xlane.f32.xlu0 %v320
          %v384 = vpop.xlane.xlu0 %383
          %v385 = vmax.f32 %v322, 1e-24
          %v386 = vmax.f32 %v324, 1e-24
          %v387 = vmax.f32 %v326, 1e-24
          %v388 = vmax.f32 %v328, 1e-24
          %v389 = vmax.f32 %v330, 1e-24
          %v390 = vmax.f32 %v332, 1e-24
          %v391 = vmax.f32 %v334, 1e-24
          %v392 = vmax.f32 %v336, 1e-24
          %v393 = vmax.f32 %v338, 1e-24
          %v394 = vmax.f32 %v340, 1e-24
          %v395 = vmax.f32 %v342, 1e-24
          %v396 = vmax.f32 %v344, 1e-24
          %v397 = vmax.f32 %v346, 1e-24
          %v398 = vmax.f32 %v348, 1e-24
          %v399 = vmax.f32 %v350, 1e-24
          %v400 = vmax.f32 %v352, 1e-24
          %v401 = vmax.f32 %v354, 1e-24
          %v402 = vmax.f32 %v356, 1e-24
          %v403 = vmax.f32 %v358, 1e-24
          %v404 = vmax.f32 %v360, 1e-24
          %v405 = vmax.f32 %v362, 1e-24
          %v406 = vmax.f32 %v364, 1e-24
          %v407 = vmax.f32 %v366, 1e-24
          %v408 = vmax.f32 %v368, 1e-24
          %v409 = vmax.f32 %v370, 1e-24
          %v410 = vmax.f32 %v372, 1e-24
          %v411 = vmax.f32 %v374, 1e-24
          %v412 = vmax.f32 %v376, 1e-24
          %v413 = vmax.f32 %v378, 1e-24
          %v414 = vmax.f32 %v380, 1e-24
          %v415 = vmax.f32 %v382, 1e-24
          %v416 = vmax.f32 %v384, 1e-24
          %v417 = vrsqrt.pop %v385
          %v418 = vrsqrt.pop %v386
          %v419 = vrsqrt.pop %v387
          %v420 = vrsqrt.pop %v388
          %v421 = vrsqrt.pop %v389
          %v422 = vrsqrt.pop %v390
          %v423 = vrsqrt.pop %v391
          %v424 = vrsqrt.pop %v392
          %v425 = vrsqrt.pop %v393
          %v426 = vrsqrt.pop %v394
          %v427 = vrsqrt.pop %v395
          %v428 = vrsqrt.pop %v396
          %v429 = vrsqrt.pop %v397
          %v430 = vrsqrt.pop %v398
          %v431 = vrsqrt.pop %v399
          %v432 = vrsqrt.pop %v400
          %v433 = vrsqrt.pop %v401
          %v434 = vrsqrt.pop %v402
          %v435 = vrsqrt.pop %v403
          %v436 = vrsqrt.pop %v404
          %v437 = vrsqrt.pop %v405
          %v438 = vrsqrt.pop %v406
          %v439 = vrsqrt.pop %v407
          %v440 = vrsqrt.pop %v408
          %v441 = vrsqrt.pop %v409
          %v442 = vrsqrt.pop %v410
          %v443 = vrsqrt.pop %v411
          %v444 = vrsqrt.pop %v412
          %v445 = vrsqrt.pop %v413
          %v446 = vrsqrt.pop %v414
          %v447 = vrsqrt.pop %v415
          %v448 = vrsqrt.pop %v416
          %v449 = vmul.f32 %v257, %v417
          %v450 = vmul.f32 %v258, %v418
          %v451 = vmul.f32 %v259, %v419
          %v452 = vmul.f32 %v260, %v420
          %v453 = vmul.f32 %v261, %v421
          %v454 = vmul.f32 %v262, %v422
          %v455 = vmul.f32 %v263, %v423
          %v456 = vmul.f32 %v264, %v424
          %v457 = vmul.f32 %v265, %v425
          %v458 = vmul.f32 %v266, %v426
          %v459 = vmul.f32 %v267, %v427
          %v460 = vmul.f32 %v268, %v428
          %v461 = vmul.f32 %v269, %v429
          %v462 = vmul.f32 %v270, %v430
          %v463 = vmul.f32 %v271, %v431
          %v464 = vmul.f32 %v272, %v432
          %v465 = vmul.f32 %v273, %v433
          %v466 = vmul.f32 %v274, %v434
          %v467 = vmul.f32 %v275, %v435
          %v468 = vmul.f32 %v276, %v436
          %v469 = vmul.f32 %v277, %v437
          %v470 = vmul.f32 %v278, %v438
          %v471 = vmul.f32 %v279, %v439
          %v472 = vmul.f32 %v280, %v440
          %v473 = vmul.f32 %v281, %v441
          %v474 = vmul.f32 %v282, %v442
          %v475 = vmul.f32 %v283, %v443
          %v476 = vmul.f32 %v284, %v444
          %v477 = vmul.f32 %v285, %v445
          %v478 = vmul.f32 %v286, %v446
          %v479 = vmul.f32 %v287, %v447
          %v480 = vmul.f32 %v288, %v448
          %481 = vst [vmem:[#allocation2] sm:$0xff] %v449
          %482 = vst [vmem:[#allocation2 + $0x8] sm:$0xff] %v450
          %483 = vst [vmem:[#allocation2 + $0x10] sm:$0xff] %v451
          %484 = vst [vmem:[#allocation2 + $0x18] sm:$0xff] %v452
          %485 = vst [vmem:[#allocation2 + $0x20] sm:$0xff] %v453
          %486 = vst [vmem:[#allocation2 + $0x28] sm:$0xff] %v454
          %487 = vst [vmem:[#allocation2 + $0x30] sm:$0xff] %v455
          %488 = vst [vmem:[#allocation2 + $0x38] sm:$0xff] %v456
          %489 = vst [vmem:[#allocation2 + $0x40] sm:$0xff] %v457
          %490 = vst [vmem:[#allocation2 + $0x48] sm:$0xff] %v458
          %491 = vst [vmem:[#allocation2 + $0x50] sm:$0xff] %v459
          %492 = vst [vmem:[#allocation2 + $0x58] sm:$0xff] %v460
          %493 = vst [vmem:[#allocation2 + $0x60] sm:$0xff] %v461
          %494 = vst [vmem:[#allocation2 + $0x68] sm:$0xff] %v462
          %495 = vst [vmem:[#allocation2 + $0x70] sm:$0xff] %v463
          %496 = vst [vmem:[#allocation2 + $0x78] sm:$0xff] %v464
          %497 = vst [vmem:[#allocation2 + $0x80] sm:$0xff] %v465
          %498 = vst [vmem:[#allocation2 + $0x88] sm:$0xff] %v466
          %499 = vst [vmem:[#allocation2 + $0x90] sm:$0xff] %v467
          %500 = vst [vmem:[#allocation2 + $0x98] sm:$0xff] %v468
          %501 = vst [vmem:[#allocation2 + $0xa0] sm:$0xff] %v469
          %502 = vst [vmem:[#allocation2 + $0xa8] sm:$0xff] %v470
          %503 = vst [vmem:[#allocation2 + $0xb0] sm:$0xff] %v471
          %504 = vst [vmem:[#allocation2 + $0xb8] sm:$0xff] %v472
          %505 = vst [vmem:[#allocation2 + $0xc0] sm:$0xff] %v473
          %506 = vst [vmem:[#allocation2 + $0xc8] sm:$0xff] %v474
          %507 = vst [vmem:[#allocation2 + $0xd0] sm:$0xff] %v475
          %508 = vst [vmem:[#allocation2 + $0xd8] sm:$0xff] %v476
          %509 = vst [vmem:[#allocation2 + $0xe0] sm:$0xff] %v477
          %510 = vst [vmem:[#allocation2 + $0xe8] sm:$0xff] %v478
          %511 = vst [vmem:[#allocation2 + $0xf0] sm:$0xff] %v479
          %512 = vst [vmem:[#allocation2 + $0xf8] sm:$0xff] %v480
        $region40: #{tpu_custom_call.1} parent=31 // pred_fallthru
          _
        %v513 = vld [vmem:[%s242] sm:$0x3]
        %v514 = vld [vmem:[#allocation2] sm:$0xff]
        %v515 = vld [vmem:[#allocation2 + $0x8] sm:$0xff]
        %v516 = vld [vmem:[#allocation2 + $0x10] sm:$0xff]
        %v517 = vld [vmem:[#allocation2 + $0x18] sm:$0xff]
        %v518 = vld [vmem:[#allocation2 + $0x20] sm:$0xff]
        %v519 = vld [vmem:[#allocation2 + $0x28] sm:$0xff]
        %v520 = vld [vmem:[#allocation2 + $0x30] sm:$0xff]
        %v521 = vld [vmem:[#allocation2 + $0x38] sm:$0xff]
        %v522 = vld [vmem:[#allocation2 + $0x40] sm:$0xff]
        %v523 = vld [vmem:[#allocation2 + $0x48] sm:$0xff]
        %v524 = vld [vmem:[#allocation2 + $0x50] sm:$0xff]
        %v525 = vld [vmem:[#allocation2 + $0x58] sm:$0xff]
        %v526 = vld [vmem:[#allocation2 + $0x60] sm:$0xff]
        %v527 = vld [vmem:[#allocation2 + $0x68] sm:$0xff]
        %v528 = vld [vmem:[#allocation2 + $0x70] sm:$0xff]
        %v529 = vld [vmem:[#allocation2 + $0x78] sm:$0xff]
        %v530 = vld [vmem:[#allocation2 + $0x80] sm:$0xff]
        %v531 = vld [vmem:[#allocation2 + $0x88] sm:$0xff]
        %v532 = vld [vmem:[#allocation2 + $0x90] sm:$0xff]
        %v533 = vld [vmem:[#allocation2 + $0x98] sm:$0xff]
        %v534 = vld [vmem:[#allocation2 + $0xa0] sm:$0xff]
        %v535 = vld [vmem:[#allocation2 + $0xa8] sm:$0xff]
        %v536 = vld [vmem:[#allocation2 + $0xb0] sm:$0xff]
        %v537 = vld [vmem:[#allocation2 + $0xb8] sm:$0xff]
        %v538 = vld [vmem:[#allocation2 + $0xc0] sm:$0xff]
        %v539 = vld [vmem:[#allocation2 + $0xc8] sm:$0xff]
        %v540 = vld [vmem:[#allocation2 + $0xd0] sm:$0xff]
        %v541 = vld [vmem:[#allocation2 + $0xd8] sm:$0xff]
        %v542 = vld [vmem:[#allocation2 + $0xe0] sm:$0xff]
        %v543 = vld [vmem:[#allocation2 + $0xe8] sm:$0xff]
        %v544 = vld [vmem:[#allocation2 + $0xf0] sm:$0xff]
        %v545 = vld [vmem:[#allocation2 + $0xf8] sm:$0xff]
        %546 = vmatprep.subr.mxu0 0.0
        %547 = vmatpush1.xpose.msra.mxu0 %v514
        %548 = vmatprep.subr.mxu0 0.0
        %549 = vmatpush1.xpose.msra.mxu0 %v515
        %550 = vmatprep.subr.mxu0 0.0
        %551 = vmatpush1.xpose.msra.mxu0 %v516
        %552 = vmatprep.subr.mxu0 0.0
        %553 = vmatpush1.xpose.msra.mxu0 %v517
        %554 = vmatprep.subr.mxu0 0.0
        %555 = vmatpush1.xpose.msra.mxu0 %v518
        %556 = vmatprep.subr.mxu0 0.0
        %557 = vmatpush1.xpose.msra.mxu0 %v519
        %558 = vmatprep.subr.mxu0 0.0
        %559 = vmatpush1.xpose.msra.mxu0 %v520
        %560 = vmatprep.subr.mxu0 0.0
        %561 = vmatpush1.xpose.msra.mxu0 %v521
        %562 = vmatprep.subr.mxu0 0.0
        %563 = vmatpush1.xpose.msra.mxu0 %v522
        %564 = vmatprep.subr.mxu0 0.0
        %565 = vmatpush1.xpose.msra.mxu0 %v523
        %566 = vmatprep.subr.mxu0 0.0
        %567 = vmatpush1.xpose.msra.mxu0 %v524
        %568 = vmatprep.subr.mxu0 0.0
        %569 = vmatpush1.xpose.msra.mxu0 %v525
        %570 = vmatprep.subr.mxu0 0.0
        %571 = vmatpush1.xpose.msra.mxu0 %v526
        %572 = vmatprep.subr.mxu0 0.0
        %573 = vmatpush1.xpose.msra.mxu0 %v527
        %574 = vmatprep.subr.mxu0 0.0
        %575 = vmatpush1.xpose.msra.mxu0 %v528
        %576 = vmatprep.subr.mxu0 0.0
        %577 = vmatpush1.xpose.msra.mxu0 %v529
        %578 = vmatprep.subr.mxu0 0.0
        %579 = vmatpush1.xpose.msra.mxu0 %v530
        %580 = vmatprep.subr.mxu0 0.0
        %581 = vmatpush1.xpose.msra.mxu0 %v531
        %582 = vmatprep.subr.mxu0 0.0
        %583 = vmatpush1.xpose.msra.mxu0 %v532
        %584 = vmatprep.subr.mxu0 0.0
        %585 = vmatpush1.xpose.msra.mxu0 %v533
        %586 = vmatprep.subr.mxu0 0.0
        %587 = vmatpush1.xpose.msra.mxu0 %v534
        %588 = vmatprep.subr.mxu0 0.0
        %589 = vmatpush1.xpose.msra.mxu0 %v535
        %590 = vmatprep.subr.mxu0 0.0
        %591 = vmatpush1.xpose.msra.mxu0 %v536
        %592 = vmatprep.subr.mxu0 0.0
        %593 = vmatpush1.xpose.msra.mxu0 %v537
        %594 = vmatprep.subr.mxu0 0.0
        %595 = vmatpush1.xpose.msra.mxu0 %v538
        %596 = vmatprep.subr.mxu0 0.0
        %597 = vmatpush1.xpose.msra.mxu0 %v539
        %598 = vmatprep.subr.mxu0 0.0
        %599 = vmatpush1.xpose.msra.mxu0 %v540
        %600 = vmatprep.subr.mxu0 0.0
        %601 = vmatpush1.xpose.msra.mxu0 %v541
        %602 = vmatprep.subr.mxu0 0.0
        %603 = vmatpush1.xpose.msra.mxu0 %v542
        %604 = vmatprep.subr.mxu0 0.0
        %605 = vmatpush1.xpose.msra.mxu0 %v543
        %606 = vmatprep.subr.mxu0 0.0
        %607 = vmatpush1.xpose.msra.mxu0 %v544
        %608 = vmatprep.subr.mxu0 0.0
        %609 = vmatpush1.xpose.msra.mxu0 %v545
        %610 = vmatprep.mubr.f32.mxu0 0.0
        %611 = vmatmul.mubr.f32.gmra.mrb[0].mxu0 %v513
        %v612 = vpop.f32.mrb[0].mxu0
        %v613 = vadd.f32 0.0, %v612
        %v614 = vpop.f32.mrb[0].mxu0
        %v615 = vadd.f32 0.0, %v614
        %616 = vdwg.mxu0
        %v617 = vmax.f32 %v613, -0.999999
        %v618 = vmax.f32 %v615, -0.999999
        %v619 = vmin.f32 %v617, 0.999999
        %v620 = vmin.f32 %v618, 0.999999
        %s621 = smul.u32 %s24, 256
        %v622 = vlaneseq
        %v623 = vand.u32 %v622, 127
        %v624 = vadd.s32 %v623, 128
        %v625 = vstv %s621
        %v626 = vadd.s32 %v625, %v623
        %v627 = vadd.s32 %v625, %v624
        %v628 = vld [vmem:[%s238] sm:$0x3]
        %629 = vset.pattern.permute.xlu0 0
        %630 = vperm.xlu0 %629, %v628
        %v631 = vpop.permute.xlu0 %630
        %vm632 = vcmp.eq.s32.totalorder %v631, %v626
        %vm633 = vcmp.eq.s32.totalorder %v631, %v627
        %v634 = vsel %vm632, %v619, 0.0
        %v635 = vsel %vm633, %v620, 0.0
        %vm636 = vcmask 1041408
        %v637 = vsel %vm636, %v634, 0.0
        %v638 = vsel %vm636, %v635, 0.0
        %v639 = vadd.f32 %v637, %v638
        %640 = vadd.xlane.f32.xlu0 %v639
        %v641 = vpop.xlane.xlu0 %640
        %v642 = vmul.f32 %v641, %v641
        %v643 = vsub.f32 1.0, %v642
        %v644 = vmax.f32 %v643, 0.0
        %v645 = vrsqrt.pop %v644
        %v646 = vmul.f32 %v644, %v645
        %vm647 = vcmp.eq.f32.partialorder %v644, inf
        %v648 = vsel %vm647, %v644, %v646
        %vm649 = vcmp.eq.f32.partialorder %v644, 0.0
        %v650 = vand.u32 %v644, 2147483648
        %v651 = vsel %vm649, %v650, %v648
        %v652 = vmul.f32 %v641, 0.87758255
        %v653 = vmul.f32 %v651, 0.47942555
        %v654 = vsub.f32 %v652, %v653
        %vm655 = vcmp.gt.f32.partialorder %v641, -0.87758255
        %v656 = vsub.f32 %v641, 0.23971277
        %v657 = vsel %vm655, %v654, %v656
        %v658 = vsel %vm632, 1, 0
        %v659 = vsel %vm633, 1, 0
        %v660 = vcvt.s32.f32 %v658
        %v661 = vcvt.s32.f32 %v659
        %v662 = vsub.f32 %v657, %v641
        %v663 = vmul.f32 %v660, %v662
        %v664 = vmul.f32 %v661, %v662
        %v665 = vadd.f32 %v619, %v663
        %v666 = vadd.f32 %v620, %v664
        %v667 = vmul.f32 %v665, 64.0
        %v668 = vmul.f32 %v666, 64.0
        %v671 = vcombine.low %v667, %v668
        %v673 = vunpack.c.l.s4 1983009808
        %v674 = vunpack.c.0.s8 %v673
        %v675 = vlaneseq
        %v676 = vshrl.u32 %v675, 7
        %v677 = vsub.s32 %v674, %v676
        %v678 = vrot.slane %v671, %v677
        %680 = vst [vmem:[%s234] sm:$0xf] %v678
        %s681 = sand.u32 %s120, 1
        %s682 = scalar_lea.sflag [#allocation5], %s681
        %s683 = sand.u32 %s120, 1
        %s684 = smul.addr %s683, 4
        %s685 = scalar_lea.vmem [#allocation6], %s684
        // Predicated region
        $region41: #{tpu_custom_call.1} parent=31 // pred_check
          %p686 = pneg %p130
        $region42: #{tpu_custom_call.1} parent=31 // pred_check_branch
          %688 = sbr.rel (%p686) target = $region44
        $region43: #{tpu_custom_call.1} parent=31 // pred_region
          %s689 = smul.u32 2, %s24
          %s690 = ssub.s32 3, %s689
          %p691 = scmp.lt.s32.totalorder %s690, 2
          %s692 = scalar_select %p691, %s690, 2
          %s693 = smul.u32 32, %s692
          %s695 = ssub.s32 64, %s693
          %696 = vsyncadd %s682, %s695
          %p697 = scmp.ne.s32.totalorder 0, %s693
          %s698 = smul.addr %s25, 3
          %s699 = sadd.s32 %s689, %s698
          %s700 = smul.addr %s699, 32
          %s701 = scalar_lea.hbm %s3, %s700
          %s702 = smul.u32 %s692, 2
          %s703 = sshll.u32 %s702, 4
          %s704 = sshll.u32 %s685, 4
          %s705 = int_to_ptr.vmem [resolvable:$true] %s704
          %707 = dma.vmem_to_hbm [thread:$0]  (%p697), %s705, %s703, %s701, %s682
        $region44: #{tpu_custom_call.1} parent=31 // pred_fallthru
          _
      $region32: #{tpu_custom_call.1} parent=5 // pred_fallthru
        _
      %p708 = scmp.le.s32.totalorder 2, %s15
      // Predicated region
      $region45: #{tpu_custom_call.1} parent=5 // pred_check
        %p709 = pneg %p708
      $region46: #{tpu_custom_call.1} parent=5 // pred_check_branch
        %711 = sbr.rel (%p709) target = $region48
      $region47: #{tpu_custom_call.1} parent=5 // pred_region
        %s712 = ssub.s32 %s15, 2
        // Predicated region
        $region49: #{tpu_custom_call.1} parent=47 // pred_check
          %p713 = pneg %p136
        $region50: #{tpu_custom_call.1} parent=47 // pred_check_branch
          %715 = sbr.rel (%p713) target = $region52
        $region51: #{tpu_custom_call.1} parent=47 // pred_region
          %s716 = sand.u32 %s121, 1
          %s717 = scalar_lea.sflag [#allocation5], %s716
          %s718 = sand.u32 %s121, 1
          %s719 = smul.addr %s718, 4
          %s720 = scalar_lea.vmem [#allocation6], %s719
          %721 = dma.done %s717, 64
        $region52: #{tpu_custom_call.1} parent=47 // pred_fallthru
          _
      $region48: #{tpu_custom_call.1} parent=5 // pred_fallthru
        _
    $region6: #{tpu_custom_call.1} parent=1 // loop_footer
      %s19 = sadd.s32 1, %s15
    $region7: #{tpu_custom_call.1} parent=1 // loop_footer_branch
      %14 = sbr.rel target = $region3
    $region8: #{tpu_custom_call.1} parent=1 // loop_exit
      _
    %722 = vsyncpa [#allocation4], 1
    %s723 = scalar_lea.sflag [#allocation4], 1
    %724 = vsyncpa %s723, 1
    %725 = vsyncpa [#allocation5], 1
    %s726 = scalar_lea.sflag [#allocation5], 1
    %727 = vsyncpa %s726, 1

</llo_original>
